<compile_context>
chip_gen: v5e
topology: v5e:2x2
jax: 0.10.0
libtpu: 0.0.40
codegen_flags: <defaults>
</compile_context>

<pallas_src>
import functools
import math

import jax
import jax.numpy as jnp
from jax.experimental import pallas as pl
from jax.experimental.pallas import tpu as pltpu


def _round_up(x, m):
    return ((x + m - 1) // m) * m


def _fc_emb_kernel(x_ref, w1_ref, b1_ref, w2_ref, b2_ref, o_ref, *, w2_pre_transposed):
    # x_ref : (T, P)        packed input rows (P logical scalars per lane-row)
    # w1_ref: (P, L)        block-diagonal placement of W1^T   (L = P*dim)
    # b1_ref: (1, L), b2_ref: (1, L)
    # w2_ref: (L, L) block-diag W2^T   (or (dim, dim) untransposed when P == 1)
    x = x_ref[...]
    if x.shape[1] == 1:
        # Linear(1, dim) degenerates to a broadcasted multiply.
        h = x * w1_ref[...] + b1_ref[...]
    else:
        h = jnp.dot(x, w1_ref[...], preferred_element_type=jnp.float32) + b1_ref[...]
    # tanh-approx GELU (matches the PyTorch GELU module exactly); tanh goes to the EUP.
    h = 0.5 * h * (1.0 + jnp.tanh(0.7978845608 * (h + 0.044715 * h * h * h)))
    if w2_pre_transposed:
        out = jnp.dot(h, w2_ref[...], preferred_element_type=jnp.float32)
    else:
        # h @ W2^T with W2 kept untransposed (MXU takes the transposed operand natively).
        out = jax.lax.dot_general(
            h, w2_ref[...],
            dimension_numbers=(((1,), (1,)), ((), ())),
            preferred_element_type=jnp.float32)
    o_ref[...] = (out + b2_ref[...]).astype(o_ref.dtype)


def fc_emb_forward(x, w1, b1, w2, b2, *, tile_rows=None):
    """Pallas implementation of FCEmb.forward.

    x : float32 array of any shape (...,)        -> output shape (..., dim)
    w1: (dim, 1)  b1: (dim,)   (torch Linear(1, dim) convention, weight=(out,in))
    w2: (dim, dim) b2: (dim,)  (torch Linear(dim, dim) convention)
    """
    orig_shape = x.shape
    dim = w1.shape[0]
    n = math.prod(orig_shape) if orig_shape else 1

    x_flat = x.reshape(-1).astype(jnp.float32)

    # --- lane packing ---------------------------------------------------------
    if dim < 128 and 128 % dim == 0:
        pack = 128 // dim
    else:
        pack = 1
    lane_dim = pack * dim

    w1_row = w1.reshape(1, dim).astype(jnp.float32)        # W1^T  (1, dim)
    b1_row = b1.reshape(1, dim).astype(jnp.float32)
    b2_row = b2.reshape(1, dim).astype(jnp.float32)

    if pack > 1:
        eye = jnp.eye(pack, dtype=jnp.float32)
        w1_k = jnp.kron(eye, w1_row)                        # (pack, lane_dim)
        w2_k = jnp.kron(eye, w2.T.astype(jnp.float32))      # (lane_dim, lane_dim) block-diag W2^T
        b1_k = jnp.tile(b1_row, (1, pack))                  # (1, lane_dim)
        b2_k = jnp.tile(b2_row, (1, pack))
        w2_pre_transposed = True
    else:
        w1_k = w1_row
        w2_k = w2.astype(jnp.float32)                       # untransposed; contracted in-kernel
        b1_k = b1_row
        b2_k = b2_row
        w2_pre_transposed = False

    # --- row tiling (bounds VMEM independent of n; enables pipelining) --------
    n_rows = pl.cdiv(n, pack)
    if tile_rows is None:
        # ~8 MiB of double-buffered tiles (x block is lane-padded to >=128 lanes);
        # well under the 32 MiB scoped / 64 MiB physical VMEM on v7x.
        bytes_per_row = 4 * 2 * (lane_dim + max(pack, 128))
        tile_rows = max(8, min(2048, (8 * 1024 * 1024) // bytes_per_row))
        tile_rows = _round_up(tile_rows, 8)
    if n_rows <= tile_rows:
        tile_rows = _round_up(n_rows, 8)
    n_rows_pad = _round_up(n_rows, tile_rows)
    grid = (n_rows_pad // tile_rows,)

    # Zero-pad to the tiled extent; padded rows pass through GELU (finite) and are
    # sliced away after the call.
    x_pad = jnp.zeros((n_rows_pad * pack,), jnp.float32).at[:n].set(x_flat)
    x2 = x_pad.reshape(n_rows_pad, pack)

    kernel = functools.partial(_fc_emb_kernel, w2_pre_transposed=w2_pre_transposed)

    out = pl.pallas_call(
        kernel,
        out_shape=jax.ShapeDtypeStruct((n_rows_pad, lane_dim), jnp.float32),
        grid=grid,
        in_specs=[
            pl.BlockSpec((tile_rows, pack), lambda i: (i, 0)),   # x: streamed row tiles
            pl.BlockSpec(w1_k.shape, lambda i: (0, 0)),          # weights: VMEM-resident
            pl.BlockSpec(b1_k.shape, lambda i: (0, 0)),
            pl.BlockSpec(w2_k.shape, lambda i: (0, 0)),
            pl.BlockSpec(b2_k.shape, lambda i: (0, 0)),
        ],
        out_specs=pl.BlockSpec((tile_rows, lane_dim), lambda i: (i, 0)),
        compiler_params=pltpu.CompilerParams(
            dimension_semantics=("parallel",),                   # 2x across v7x TensorCores
        ),
    )(x2, w1_k, b1_k, w2_k, b2_k)

    # (n_rows_pad, pack*dim) row-major == (n_rows_pad*pack, dim) row-major.
    out = out.reshape(n_rows_pad * pack, dim)[:n]
    return out.reshape(*orig_shape, dim)


def _reference_forward(x, w1, b1, w2, b2):
    """Pure-JAX reference identical to the PyTorch module."""
    xe = x[..., None]                                      # unsqueeze(-1)
    h = xe @ w1.T + b1                                     # Linear(1, dim)
    h = 0.5 * h * (1.0 + jnp.tanh(0.7978845608 * (h + 0.044715 * h ** 3)))
    return h @ w2.T + b2                                   # Linear(dim, dim)


if __name__ == "__main__":
    dim = 32
    batch, seq = 2, 8

    key = jax.random.PRNGKey(0)
    kx, k1, k2, k3, k4, kx2 = jax.random.split(key, 6)

    # deterministic synthetic parameters (torch Linear shape conventions)
    w1 = jax.random.normal(k1, (dim, 1), dtype=jnp.float32) * 0.5
    b1 = jax.random.normal(k2, (dim,), dtype=jnp.float32) * 0.1
    w2 = jax.random.normal(k3, (dim, dim), dtype=jnp.float32) * (1.0 / math.sqrt(dim))
    b2 = jax.random.normal(k4, (dim,), dtype=jnp.float32) * 0.1

    # small shape implied by the module (a (batch, seq) scalar field)
    x = jax.random.normal(kx, (batch, seq), dtype=jnp.float32)
    # awkward size: n not a multiple of the lane packing / row tile (exercises padding)
    x_odd = jax.random.normal(kx2, (3, 17), dtype=jnp.float32)

    for xi in (x, x_odd):
        out = jax.block_until_ready(fc_emb_forward(xi, w1, b1, w2, b2))
        ref = _reference_forward(xi, w1, b1, w2, b2)
        assert out.shape == (*xi.shape, dim), out.shape
        assert jnp.allclose(out, ref, atol=1e-4, rtol=1e-4), float(jnp.max(jnp.abs(out - ref)))

    print("KERNEL_OK")
</pallas_src>

<mosaic_0001>
module attributes {stable_mosaic.version = 11 : i64} {
  func.func @_fc_emb_kernel(%arg0: i32, %arg1: memref<8x4xf32, #tpu.memory_space<vmem>>, %arg2: memref<4x128xf32, #tpu.memory_space<vmem>>, %arg3: memref<1x128xf32, #tpu.memory_space<vmem>>, %arg4: memref<128x128xf32, #tpu.memory_space<vmem>>, %arg5: memref<1x128xf32, #tpu.memory_space<vmem>>, %arg6: memref<8x128xf32, #tpu.memory_space<vmem>>) attributes {dimension_semantics = [#tpu.dimension_semantics<parallel>], iteration_bounds = array<i64: 1>, scalar_prefetch = 0 : i64, scratch_operands = 0 : i64, tpu.core_type = #tpu.core_type<tc>, window_params = [{transform_indices = @transform_0, window_bounds = array<i64: 8, 4>}, {pipeline_mode = #tpu.pipeline_mode<synchronous>, transform_indices = @transform_1, window_bounds = array<i64: 4, 128>}, {pipeline_mode = #tpu.pipeline_mode<synchronous>, transform_indices = @transform_2, window_bounds = array<i64: 1, 128>}, {pipeline_mode = #tpu.pipeline_mode<synchronous>, transform_indices = @transform_3, window_bounds = array<i64: 128, 128>}, {pipeline_mode = #tpu.pipeline_mode<synchronous>, transform_indices = @transform_4, window_bounds = array<i64: 1, 128>}, {transform_indices = @transform_5, window_bounds = array<i64: 8, 128>}]} {
    %c0 = arith.constant 0 : index
    %c0_0 = arith.constant 0 : index
    %0 = vector.load %arg1[%c0, %c0_0] : memref<8x4xf32, #tpu.memory_space<vmem>>, vector<8x4xf32>
    %c0_1 = arith.constant 0 : index
    %c0_2 = arith.constant 0 : index
    %1 = vector.load %arg2[%c0_1, %c0_2] : memref<4x128xf32, #tpu.memory_space<vmem>>, vector<4x128xf32>
    %cst = arith.constant dense<0.000000e+00> : vector<8x128xf32>
    %2 = tpu.matmul %0, %1, %cst {dimension_numbers = #tpu.dot_dimension_numbers<[1], [0], [0], [1], [0, 0, 1, 1], [], []>} : vector<8x4xf32>, vector<4x128xf32>, vector<8x128xf32> -> vector<8x128xf32>
    %c0_3 = arith.constant 0 : index
    %c0_4 = arith.constant 0 : index
    %3 = vector.load %arg3[%c0_3, %c0_4] : memref<1x128xf32, #tpu.memory_space<vmem>>, vector<1x128xf32>
    %4 = vector.broadcast %3 : vector<1x128xf32> to vector<8x128xf32>
    %5 = arith.addf %2, %4 : vector<8x128xf32>
    %cst_5 = arith.constant 5.000000e-01 : f32
    %6 = vector.broadcast %cst_5 : f32 to vector<8x128xf32>
    %7 = arith.mulf %6, %5 : vector<8x128xf32>
    %cst_6 = arith.constant 4.471500e-02 : f32
    %8 = vector.broadcast %cst_6 : f32 to vector<8x128xf32>
    %9 = arith.mulf %8, %5 : vector<8x128xf32>
    %10 = arith.mulf %9, %5 : vector<8x128xf32>
    %11 = arith.mulf %10, %5 : vector<8x128xf32>
    %12 = arith.addf %5, %11 : vector<8x128xf32>
    %cst_7 = arith.constant 0.797884583 : f32
    %13 = vector.broadcast %cst_7 : f32 to vector<8x128xf32>
    %14 = arith.mulf %13, %12 : vector<8x128xf32>
    %15 = math.tanh %14 : vector<8x128xf32>
    %cst_8 = arith.constant 1.000000e+00 : f32
    %16 = vector.broadcast %cst_8 : f32 to vector<8x128xf32>
    %17 = arith.addf %16, %15 : vector<8x128xf32>
    %18 = arith.mulf %7, %17 : vector<8x128xf32>
    %c0_9 = arith.constant 0 : index
    %c0_10 = arith.constant 0 : index
    %19 = vector.load %arg4[%c0_9, %c0_10] : memref<128x128xf32, #tpu.memory_space<vmem>>, vector<128x128xf32>
    %cst_11 = arith.constant dense<0.000000e+00> : vector<8x128xf32>
    %20 = tpu.matmul %18, %19, %cst_11 {dimension_numbers = #tpu.dot_dimension_numbers<[1], [0], [0], [1], [0, 0, 1, 1], [], []>} : vector<8x128xf32>, vector<128x128xf32>, vector<8x128xf32> -> vector<8x128xf32>
    %c0_12 = arith.constant 0 : index
    %c0_13 = arith.constant 0 : index
    %21 = vector.load %arg5[%c0_12, %c0_13] : memref<1x128xf32, #tpu.memory_space<vmem>>, vector<1x128xf32>
    %22 = vector.broadcast %21 : vector<1x128xf32> to vector<8x128xf32>
    %23 = arith.addf %20, %22 : vector<8x128xf32>
    %c0_14 = arith.constant 0 : index
    %c0_15 = arith.constant 0 : index
    %24 = vector.load %arg6[%c0_14, %c0_15] : memref<8x128xf32, #tpu.memory_space<vmem>>, vector<8x128xf32>
    tpu.vector_store %arg6[%c0_14, %c0_15], %23 {strides = array<i32>} : memref<8x128xf32, #tpu.memory_space<vmem>>, vector<8x128xf32>,
    return
  }
  func.func @transform_0(%arg0: i32) -> (i32, i32) {
    %c0_i32 = arith.constant 0 : i32
    %c0_i32_0 = arith.constant 0 : i32
    return %arg0, %c0_i32 : i32, i32
  }
  func.func @transform_1(%arg0: i32) -> (i32, i32) {
    %c0_i32 = arith.constant 0 : i32
    %c0_i32_0 = arith.constant 0 : i32
    %c0_i32_1 = arith.constant 0 : i32
    return %c0_i32, %c0_i32_0 : i32, i32
  }
  func.func @transform_2(%arg0: i32) -> (i32, i32) {
    %c0_i32 = arith.constant 0 : i32
    %c0_i32_0 = arith.constant 0 : i32
    %c0_i32_1 = arith.constant 0 : i32
    return %c0_i32, %c0_i32_0 : i32, i32
  }
  func.func @transform_3(%arg0: i32) -> (i32, i32) {
    %c0_i32 = arith.constant 0 : i32
    %c0_i32_0 = arith.constant 0 : i32
    %c0_i32_1 = arith.constant 0 : i32
    return %c0_i32, %c0_i32_0 : i32, i32
  }
  func.func @transform_4(%arg0: i32) -> (i32, i32) {
    %c0_i32 = arith.constant 0 : i32
    %c0_i32_0 = arith.constant 0 : i32
    %c0_i32_1 = arith.constant 0 : i32
    return %c0_i32, %c0_i32_0 : i32, i32
  }
  func.func @transform_5(%arg0: i32) -> (i32, i32) {
    %c0_i32 = arith.constant 0 : i32
    %c0_i32_0 = arith.constant 0 : i32
    return %arg0, %c0_i32 : i32, i32
  }
}

</mosaic_0001>

<llo_original>
// kernel: tpu_custom_call.1
$region0: #{tpu_custom_call.1}
  #allocation0 [shape = 'u32[]', space=smem, size = 0x4, offset = 0x4, fixed_abs, tag = 'smem constant byte address 0x4 - core index']
  #allocation1 [shape = 'u32[72,128]{1,0:T(1,128)}', space=vmem, size = 0x9000, scoped, tag = 'internal scratch']
  %s0 = inlined_call_operand.vmem [shape: f32[8,4], index: 0, kind: input, shape index: {}]
  %s1 = inlined_call_operand.vmem [shape: f32[4,128], index: 1, kind: input, shape index: {}]
  %s2 = inlined_call_operand.vmem [shape: f32[1,128], index: 2, kind: input, shape index: {}]
  %s3 = inlined_call_operand.hbm [shape: f32[128,128], index: 3, kind: input, shape index: {}]
  %s4 = inlined_call_operand.vmem [shape: f32[1,128], index: 4, kind: input, shape index: {}]
  %s5 = inlined_call_operand.hbm [shape: f32[8,128], index: 5, kind: output, shape index: {}]
  %s6 = sld [smem:[#allocation0]]
  $region34: #{tpu_custom_call.1} parent=0
    _
  %s8 = ssub.s32 1, %s6
  %s9 = scalar_select 0, %s8, %s6
  $region1: #{tpu_custom_call.1} parent=0
    #allocation2 [shape = 'u8[65536]{0}', space=vmem, size = 0x10000, scoped, tag = 'input window, operand 3, single buffered']
    #allocation3 [shape = 's32[1]{0}', space=sflag, size = 0x4, scoped, tag = 'scoped memory for tpu_custom_call.1']
    #allocation4 [shape = 's32[1]{0}', space=sflag, size = 0x4, scoped, tag = 'scoped memory for tpu_custom_call.1']
    #allocation5 [shape = 'u8[4096]{0}', space=vmem, size = 0x1000, scoped, tag = 'output window, operand 0, single buffered']
    %10 = vsyncpa [#allocation3], 0
    %11 = vsyncpa [#allocation4], 0
    // Predicated region
    $region2: #{tpu_custom_call.1} parent=1 // pred_check
      _
    $region3: #{tpu_custom_call.1} parent=1 // pred_check_branch
      %13 = sbr.rel (0) target = $region5
    $region4: #{tpu_custom_call.1} parent=1 // pred_region
      _
    $region5: #{tpu_custom_call.1} parent=1 // pred_fallthru
      _
    // Predicated region
    $region6: #{tpu_custom_call.1} parent=1 // pred_check
      _
    $region7: #{tpu_custom_call.1} parent=1 // pred_check_branch
      %15 = sbr.rel (0) target = $region9
    $region8: #{tpu_custom_call.1} parent=1 // pred_region
      _
    $region9: #{tpu_custom_call.1} parent=1 // pred_fallthru
      _
    // Predicated region
    $region10: #{tpu_custom_call.1} parent=1 // pred_check
      _
    $region11: #{tpu_custom_call.1} parent=1 // pred_check_branch
      %17 = sbr.rel (0) target = $region13
    $region12: #{tpu_custom_call.1} parent=1 // pred_region
      _
    $region13: #{tpu_custom_call.1} parent=1 // pred_fallthru
      _
    // Predicated region
    $region14: #{tpu_custom_call.1} parent=1 // pred_check
      _
    $region15: #{tpu_custom_call.1} parent=1 // pred_check_branch
      %19 = sbr.rel (0) target = $region17
    $region16: #{tpu_custom_call.1} parent=1 // pred_region
      %21 = vsyncadd [#allocation3], 0
      %s22 = sshll.u32 %s3, 4
      %s23 = int_to_ptr.hbm [resolvable:$true] %s22
      %s24 = sshll.u32 [#allocation2], 4
      %s25 = int_to_ptr.vmem [resolvable:$true] %s24
      %30 = dma.hbm_to_vmem [thread:$0]  %s23, 2048, %s25, [#allocation3], 128, 128, 8
    $region17: #{tpu_custom_call.1} parent=1 // pred_fallthru
      _
    // Predicated region
    $region18: #{tpu_custom_call.1} parent=1 // pred_check
      _
    $region19: #{tpu_custom_call.1} parent=1 // pred_check_branch
      %32 = sbr.rel (0) target = $region21
    $region20: #{tpu_custom_call.1} parent=1 // pred_region
      _
    $region21: #{tpu_custom_call.1} parent=1 // pred_fallthru
      _
    // Predicated region
    $region22: #{tpu_custom_call.1} parent=1 // pred_check
      _
    $region23: #{tpu_custom_call.1} parent=1 // pred_check_branch
      %34 = sbr.rel (0) target = $region25
    $region24: #{tpu_custom_call.1} parent=1 // pred_region
      %36 = dma.done [#allocation3], 2048
    $region25: #{tpu_custom_call.1} parent=1 // pred_fallthru
      _
    %v37 = vld [vmem:[%s0] sm:$0xff]
    %v38 = vld [vmem:[%s1] sm:$0xf]
    %v39 = vld [vmem:[%s2] sm:$0x1]
    %v41 = vperm.slane %v39, 0
    %vm43 = vcmask 31744
    %v45 = vsel %vm43, %v37, 0
    %vm47 = vcmask 1043456
    %v49 = vsel %vm47, %v38, 0
    %51 = vmatpush.msra.mxu0 0.0
    %52 = vmatpush.msra.mxu0 0.0
    %53 = vmatpush.msra.mxu0 0.0
    %54 = vmatpush.msra.mxu0 0.0
    %55 = vmatpush.msra.mxu0 0.0
    %56 = vmatpush.msra.mxu0 0.0
    %57 = vmatpush.msra.mxu0 0.0
    %58 = vmatpush.msra.mxu0 0.0
    %59 = vmatpush.msra.mxu0 0.0
    %60 = vmatpush.msra.mxu0 0.0
    %61 = vmatpush.msra.mxu0 0.0
    %62 = vmatpush.msra.mxu0 0.0
    %63 = vmatpush.msra.mxu0 0.0
    %64 = vmatpush.msra.mxu0 0.0
    %65 = vmatpush.msra.mxu0 0.0
    %66 = vmatpush.msra.mxu0 %v49
    %67 = vmatmul.f32.gmra.mxu0 %v45
    %v68 = vpop.f32.mrf.mxu0
    %v69 = vadd.f32 %v41, %v68
    %70 = vdwg.mxu0
    %v71 = vmul.f32 %v69, 0.5
    %v72 = vmul.f32 %v69, 0.044715
    %v73 = vmul.f32 %v72, %v69
    %v74 = vmul.f32 %v73, %v69
    %v75 = vadd.f32 %v69, %v74
    %v76 = vmul.f32 %v75, 0.7978846
    %v77 = vtanh.pop %v76
    %v78 = vadd.f32 %v77, 1.0
    %v79 = vmul.f32 %v71, %v78
    %v80 = vld [vmem:[#allocation2] sm:$0xff]
    %v81 = vld [vmem:[#allocation2 + $0x8] sm:$0xff]
    %v82 = vld [vmem:[#allocation2 + $0x10] sm:$0xff]
    %v83 = vld [vmem:[#allocation2 + $0x18] sm:$0xff]
    %v84 = vld [vmem:[#allocation2 + $0x20] sm:$0xff]
    %v85 = vld [vmem:[#allocation2 + $0x28] sm:$0xff]
    %v86 = vld [vmem:[#allocation2 + $0x30] sm:$0xff]
    %v87 = vld [vmem:[#allocation2 + $0x38] sm:$0xff]
    %v88 = vld [vmem:[#allocation2 + $0x40] sm:$0xff]
    %v89 = vld [vmem:[#allocation2 + $0x48] sm:$0xff]
    %v90 = vld [vmem:[#allocation2 + $0x50] sm:$0xff]
    %v91 = vld [vmem:[#allocation2 + $0x58] sm:$0xff]
    %v92 = vld [vmem:[#allocation2 + $0x60] sm:$0xff]
    %v93 = vld [vmem:[#allocation2 + $0x68] sm:$0xff]
    %v94 = vld [vmem:[#allocation2 + $0x70] sm:$0xff]
    %v95 = vld [vmem:[#allocation2 + $0x78] sm:$0xff]
    %v96 = vld [vmem:[%s4] sm:$0x1]
    %v98 = vperm.slane %v96, 0
    %100 = vmatpush.msra.mxu0 %v95
    %101 = vmatpush.msra.mxu0 %v94
    %102 = vmatpush.msra.mxu0 %v93
    %103 = vmatpush.msra.mxu0 %v92
    %104 = vmatpush.msra.mxu0 %v91
    %105 = vmatpush.msra.mxu0 %v90
    %106 = vmatpush.msra.mxu0 %v89
    %107 = vmatpush.msra.mxu0 %v88
    %108 = vmatpush.msra.mxu0 %v87
    %109 = vmatpush.msra.mxu0 %v86
    %110 = vmatpush.msra.mxu0 %v85
    %111 = vmatpush.msra.mxu0 %v84
    %112 = vmatpush.msra.mxu0 %v83
    %113 = vmatpush.msra.mxu0 %v82
    %114 = vmatpush.msra.mxu0 %v81
    %115 = vmatpush.msra.mxu0 %v80
    %116 = vmatmul.f32.gmra.mxu0 %v79
    %v117 = vpop.f32.mrf.mxu0
    %v118 = vadd.f32 %v98, %v117
    %119 = vdwg.mxu0
    %120 = vst [vmem:[#allocation5] sm:$0xff] %v118
    // Predicated region
    $region26: #{tpu_custom_call.1} parent=1 // pred_check
      _
    $region27: #{tpu_custom_call.1} parent=1 // pred_check_branch
      %122 = sbr.rel (0) target = $region29
    $region28: #{tpu_custom_call.1} parent=1 // pred_region
      %124 = vsyncadd [#allocation4], 0
      %s126 = sshll.u32 [#allocation5], 4
      %s127 = int_to_ptr.vmem [resolvable:$true] %s126
      %s128 = sshll.u32 %s5, 4
      %s129 = int_to_ptr.hbm [resolvable:$true] %s128
      %131 = dma.vmem_to_hbm [thread:$0]  %s127, 128, %s129, [#allocation4]
    $region29: #{tpu_custom_call.1} parent=1 // pred_fallthru
      _
    // Predicated region
    $region30: #{tpu_custom_call.1} parent=1 // pred_check
      _
    $region31: #{tpu_custom_call.1} parent=1 // pred_check_branch
      %133 = sbr.rel (0) target = $region33
    $region32: #{tpu_custom_call.1} parent=1 // pred_region
      %135 = dma.done [#allocation4], 128
    $region33: #{tpu_custom_call.1} parent=1 // pred_fallthru
      _
    %136 = vsyncpa [#allocation3], 1
    %137 = vsyncpa [#allocation4], 1

</llo_original>
